<compile_context>
chip_gen: v5e
topology: v5e:2x2
jax: 0.10.0
libtpu: 0.0.40
codegen_flags: <defaults>
</compile_context>

<pallas_src>
import jax
import jax.numpy as jnp
from jax import lax
from jax.experimental import pallas as pl
from jax.experimental.pallas import tpu as pltpu

LANE = 128
SUBLANE = 8


def _round_up(n, m):
    return ((n + m - 1) // m) * m


def _pad2(arr, rows, cols, dtype):
    """Zero-pad a 2-D array to (rows, cols) in `dtype` (no-op if already there)."""
    arr = arr.astype(dtype)
    if arr.shape == (rows, cols):
        return arr
    out = jnp.zeros((rows, cols), dtype)
    return out.at[: arr.shape[0], : arr.shape[1]].set(arr)


def _full_spec(shape):
    nd = len(shape)
    return pl.BlockSpec(shape, lambda i, _nd=nd: (0,) * _nd)


def _pick_vmem_limit_bytes():
    """~3/4 of this generation's physical VMEM, capped at 100 MiB.

    v5e/v6e have 128 MiB per TensorCore (-> ~96-100 MiB budget), v7x only
    64 MiB (-> ~48 MiB).  Falls back to the v7x-safe value if the query fails.
    """
    try:
        cap = getattr(pltpu.get_tpu_info(), "vmem_capacity_bytes", None)
    except Exception:
        cap = None
    if not cap:
        cap = 64 * 1024 * 1024
    return int(min(cap * 3 // 4, 100 * 1024 * 1024))


# --------------------------- Pallas kernels ---------------------------------

def gcn_stream_kernel(a_ref, x_ref, indt_ref, w1_ref, b1_ref, c_ref,
                      ax_acc, pa_acc):
    """Single streamed pass over A_hat: GCN layer 1 + folded pooled readout.

    grid = (row tiles i : "parallel", reduction/column tiles k : "arbitrary")

      ax_acc[m, f] += A[i, k] @ X[k]                    (f32 accumulate)
      pa_acc[b, m] += IND_T[:, k] . A[i, k]  (contract A columns)
                    == unnormalized (P @ A)[:, i_rows]  (A_hat symmetric)
    at the last k:
      h1  = relu(ax_acc @ W1 + b1)                      [tile, Hp]
      c_i = pa_acc @ h1                                 [Bp, Hp]   (layer-2 re-assoc)
    The 1/|graph| mean normalization and the layer-2 weights are applied in
    the tiny head kernel, so layer 2 never materializes an [N, E] tensor.
    """
    k = pl.program_id(1)

    @pl.when(k == 0)
    def _init():
        ax_acc[...] = jnp.zeros_like(ax_acc)
        pa_acc[...] = jnp.zeros_like(pa_acc)

    a = a_ref[...]                                              # [tile, tile] bf16
    ax_acc[...] += jnp.dot(a, x_ref[...],
                           preferred_element_type=jnp.float32)
    # Contract dim 1 of both operands (standard "q @ k.T" pattern); exact
    # pooled-row reduction because A_hat is symmetric.
    pa_acc[...] += lax.dot_general(indt_ref[...], a,
                                   dimension_numbers=(((1,), (1,)), ((), ())),
                                   preferred_element_type=jnp.float32)

    @pl.when(k == pl.num_programs(1) - 1)
    def _finalize():
        h1 = jnp.dot(ax_acc[...].astype(jnp.bfloat16), w1_ref[...],
                     preferred_element_type=jnp.float32) + b1_ref[...]
        h1 = jnp.maximum(h1, 0.0).astype(jnp.bfloat16)          # [tile, Hp]
        c_ref[0] = jnp.dot(pa_acc[...].astype(jnp.bfloat16), h1,
                           preferred_element_type=jnp.float32)  # [Bp, Hp]


def pooled_head_kernel(c_ref, cnt_ref, w2_ref, b2_ref, wm1_ref, bm1_ref,
                       wm2_ref, bm2_ref, out_ref):
    """Tiny epilogue: exact mean-pool normalize, GCN layer-2 weights, MLP head."""
    ph1 = jnp.sum(c_ref[...], axis=0) / cnt_ref[...]            # [Bp, Hp] f32
    emb = jnp.dot(ph1.astype(jnp.bfloat16), w2_ref[...],
                  preferred_element_type=jnp.float32) + b2_ref[...]
    m1 = jnp.dot(emb.astype(jnp.bfloat16), wm1_ref[...],
                 preferred_element_type=jnp.float32) + bm1_ref[...]
    m1 = jnp.maximum(m1, 0.0).astype(jnp.bfloat16)
    out = jnp.dot(m1, wm2_ref[...],
                  preferred_element_type=jnp.float32) + bm2_ref[...]
    out_ref[...] = out.astype(out_ref.dtype)


# ------------------------------ wrapper --------------------------------------

def end_to_end_forward(a_hat, x, batch, num_graphs, params, *, tile_n=1024):
    """EndtoEnd forward: out = mlp(mean_pool(GCN2(GCN1(x, A_hat)), batch)).

    a_hat : [N, N] symmetric normalized adjacency (D^-1/2 (A+I) D^-1/2),
            ideally already stored in bf16 (see build_normalized_adjacency).
    x     : [N, F_in] node features.
    batch : [N] int graph id per node (mean pooling per graph).
    """
    w1, b1, w2, b2, wm1, bm1, wm2, bm2 = params
    n, f_in = x.shape
    hidden = w1.shape[1]
    emb_dim = w2.shape[1]
    mlp_hidden = wm1.shape[1]
    n_classes = wm2.shape[1]

    # ---- pad every matmul dim to full 128 lanes (exact through ReLU) ----
    fp = _round_up(f_in, LANE)
    hp = _round_up(hidden, LANE)
    ep = _round_up(emb_dim, LANE)
    mp = _round_up(mlp_hidden, LANE)
    cp = _round_up(n_classes, LANE)
    bp = _round_up(max(num_graphs, SUBLANE), SUBLANE)

    tile_n = min(tile_n, _round_up(n, LANE))
    np_ = _round_up(n, tile_n)
    ni = np_ // tile_n          # node-row tiles ("parallel")
    nk = np_ // tile_n          # reduction tiles ("arbitrary", last grid axis)

    bf16, f32 = jnp.bfloat16, jnp.float32

    # A_hat / X padded + cast once (no-op copies when prepared upstream).
    a_p = _pad2(a_hat, np_, np_, bf16)
    x_p = _pad2(x, np_, fp, bf16)

    # Transposed 0/1 pool indicator (exact in bf16) + per-graph node counts.
    if np_ > n:
        batch_p = jnp.concatenate(
            [batch.astype(jnp.int32), jnp.full((np_ - n,), -1, jnp.int32)])
    else:
        batch_p = batch.astype(jnp.int32)
    ind_t = (jnp.arange(bp, dtype=jnp.int32)[:, None]
             == batch_p[None, :]).astype(bf16)                              # [Bp, Np]
    counts = jnp.maximum(jnp.sum(ind_t.astype(f32), axis=1, keepdims=True), 1.0)  # [Bp, 1]

    w1_p = _pad2(w1, fp, hp, bf16)
    b1_p = _pad2(b1, 1, hp, f32)
    w2_p = _pad2(w2, hp, ep, bf16)
    b2_p = _pad2(b2, 1, ep, f32)
    wm1_p = _pad2(wm1, ep, mp, bf16)
    bm1_p = _pad2(bm1, 1, mp, f32)
    wm2_p = _pad2(wm2, mp, cp, bf16)
    bm2_p = _pad2(bm2, 1, cp, f32)

    vmem_limit = _pick_vmem_limit_bytes()

    # ---- heavy streamed pass over A_hat (double-buffered by BlockSpec) ----
    c_partials = pl.pallas_call(
        gcn_stream_kernel,
        out_shape=jax.ShapeDtypeStruct((ni, bp, hp), jnp.float32),
        grid_spec=pltpu.PrefetchScalarGridSpec(
            num_scalar_prefetch=0,
            grid=(ni, nk),
            in_specs=[
                pl.BlockSpec((tile_n, tile_n), lambda i, k: (i, k)),  # A tile
                pl.BlockSpec((tile_n, fp), lambda i, k: (k, 0)),      # X rows = A cols
                pl.BlockSpec((bp, tile_n), lambda i, k: (0, k)),      # pool indicator^T
                pl.BlockSpec((fp, hp), lambda i, k: (0, 0)),          # W1 (resident)
                pl.BlockSpec((1, hp), lambda i, k: (0, 0)),           # b1 (resident)
            ],
            out_specs=pl.BlockSpec((1, bp, hp), lambda i, k: (i, 0, 0)),
            scratch_shapes=[pltpu.VMEM((tile_n, fp), jnp.float32),    # A@X accumulator
                            pltpu.VMEM((bp, tile_n), jnp.float32)]),  # (P@A) accumulator
        compiler_params=pltpu.CompilerParams(
            dimension_semantics=("parallel", "arbitrary"),
            vmem_limit_bytes=vmem_limit),
    )(a_p, x_p, ind_t, w1_p, b1_p)

    # ---- tiny head: mean-pool normalize + GCN layer 2 + MLP ----
    head_ins = (c_partials, counts, w2_p, b2_p, wm1_p, bm1_p, wm2_p, bm2_p)
    out_padded = pl.pallas_call(
        pooled_head_kernel,
        out_shape=jax.ShapeDtypeStruct((bp, cp), jnp.float32),
        grid=(1,),
        in_specs=[_full_spec(t.shape) for t in head_ins],
        out_specs=_full_spec((bp, cp)),
        compiler_params=pltpu.CompilerParams(
            dimension_semantics=("arbitrary",),
            vmem_limit_bytes=vmem_limit),
    )(*head_ins)

    return out_padded[:num_graphs, :n_classes]


# ----------------------- plain-JAX glue (graph prep) -------------------------

def build_normalized_adjacency(edge_index, num_nodes, dtype=jnp.bfloat16):
    """Symmetric-normalized dense adjacency with self loops: D^-1/2 (A+I) D^-1/2.

    Built once per graph and stored directly in the kernel's matmul dtype so
    the per-forward pass never re-reads/re-casts it.
    """
    src, dst = edge_index[0], edge_index[1]
    a = jnp.zeros((num_nodes, num_nodes), jnp.float32)
    a = a.at[src, dst].set(1.0)
    a = jnp.maximum(a, a.T)                        # undirected
    a = a + jnp.eye(num_nodes, dtype=jnp.float32)  # self loops
    deg = jnp.sum(a, axis=1)
    d_inv_sqrt = jnp.where(deg > 0, 1.0 / jnp.sqrt(deg), 0.0)
    return (a * d_inv_sqrt[:, None] * d_inv_sqrt[None, :]).astype(dtype)


def build_mean_pool(batch, num_graphs):
    """P[b, n] = 1/|graph b| if node n in graph b else 0 (reference only)."""
    onehot = (batch[None, :] == jnp.arange(num_graphs)[:, None]).astype(jnp.float32)
    counts = jnp.maximum(jnp.sum(onehot, axis=1, keepdims=True), 1.0)
    return onehot / counts


def init_params(key, f_in, hidden, emb_dim, mlp_hidden, n_classes):
    ks = jax.random.split(key, 4)
    scale = 0.1
    w1 = scale * jax.random.normal(ks[0], (f_in, hidden), jnp.float32)
    b1 = jnp.zeros((1, hidden), jnp.float32)
    w2 = scale * jax.random.normal(ks[1], (hidden, emb_dim), jnp.float32)
    b2 = jnp.zeros((1, emb_dim), jnp.float32)
    wm1 = scale * jax.random.normal(ks[2], (emb_dim, mlp_hidden), jnp.float32)
    bm1 = 0.01 * jnp.ones((1, mlp_hidden), jnp.float32)
    wm2 = scale * jax.random.normal(ks[3], (mlp_hidden, n_classes), jnp.float32)
    bm2 = jnp.zeros((1, n_classes), jnp.float32)
    return (w1, b1, w2, b2, wm1, bm1, wm2, bm2)


if __name__ == "__main__":
    key = jax.random.PRNGKey(0)
    k_x, k_p = jax.random.split(key)

    # Small, module-consistent shapes; N=256 nodes -> a 2x2 tile grid at
    # tile_n=128 so the pipelined accumulator path is actually exercised.
    NODES_PER_GRAPH, NUM_GRAPHS = 64, 4
    N = NODES_PER_GRAPH * NUM_GRAPHS
    F_IN, HIDDEN, EMB, MLP_HIDDEN, N_CLASSES = 32, 32, 32, 32, 4

    x = jax.random.normal(k_x, (N, F_IN), jnp.float32)

    # Deterministic edges: a ring inside each graph (edge_attr=None is unused
    # by this GCN embed_model, exactly as in the reference forward).
    nodes = jnp.arange(N, dtype=jnp.int32)
    batch = nodes // NODES_PER_GRAPH
    ring_next = (nodes + 1) % NODES_PER_GRAPH + batch * NODES_PER_GRAPH
    edge_index = jnp.stack([nodes, ring_next])

    a_hat = build_normalized_adjacency(edge_index, N)        # bf16, symmetric
    params = init_params(k_p, F_IN, HIDDEN, EMB, MLP_HIDDEN, N_CLASSES)

    out = end_to_end_forward(a_hat, x, batch, NUM_GRAPHS, params, tile_n=128)
    out = jax.block_until_ready(out)
    assert out.shape == (NUM_GRAPHS, N_CLASSES)

    # --- reference 1: original (unfolded) module math in f32 -> loose tol ---
    w1, b1, w2, b2, wm1, bm1, wm2, bm2 = params
    a32 = a_hat.astype(jnp.float32)
    pool = build_mean_pool(batch, NUM_GRAPHS)
    h1 = jnp.maximum(a32 @ (x @ w1) + b1, 0.0)
    h2 = a32 @ (h1 @ w2) + b2
    emb = pool @ h2
    ref_f32 = jnp.maximum(emb @ wm1 + bm1, 0.0) @ wm2 + bm2
    assert jnp.allclose(out, ref_f32, atol=5e-2, rtol=5e-2), \
        float(jnp.max(jnp.abs(out - ref_f32)))

    # --- reference 2: mirror the kernel's bf16/f32-accumulate math -> tight tol ---
    bf = jnp.bfloat16
    dot = lambda a_, b_: jnp.dot(a_, b_, preferred_element_type=jnp.float32)
    a16, x16 = a_hat.astype(bf), x.astype(bf)
    ind16 = (batch[:, None] == jnp.arange(NUM_GRAPHS)[None, :]).astype(bf)   # [N, B]
    counts = jnp.maximum(jnp.sum(ind16.astype(jnp.float32), axis=0), 1.0)    # [B]
    h1r = jnp.maximum(dot(dot(a16, x16).astype(bf), w1.astype(bf)) + b1,
                      0.0).astype(bf)
    pa_un = dot(a16, ind16)                              # [N, B] == kernel pa_acc^T
    ph1 = lax.dot_general(pa_un.astype(bf), h1r,
                          dimension_numbers=(((0,), (0,)), ((), ())),
                          preferred_element_type=jnp.float32) / counts[:, None]
    embr = dot(ph1.astype(bf), w2.astype(bf)) + b2
    m1r = jnp.maximum(dot(embr.astype(bf), wm1.astype(bf)) + bm1, 0.0).astype(bf)
    ref_bf16 = dot(m1r, wm2.astype(bf)) + bm2
    assert jnp.allclose(out, ref_bf16, atol=5e-3, rtol=5e-3), \
        float(jnp.max(jnp.abs(out - ref_bf16)))

    print("KERNEL_OK")
</pallas_src>

<mosaic_0001>
module attributes {stable_mosaic.version = 11 : i64} {
  func.func @gcn_stream_kernel(%arg0: i32, %arg1: i32, %arg2: memref<128x128xbf16, #tpu.memory_space<vmem>>, %arg3: memref<128x128xbf16, #tpu.memory_space<vmem>>, %arg4: memref<8x128xbf16, #tpu.memory_space<vmem>>, %arg5: memref<128x128xbf16, #tpu.memory_space<vmem>>, %arg6: memref<1x128xf32, #tpu.memory_space<vmem>>, %arg7: memref<1x8x128xf32, #tpu.memory_space<vmem>>, %arg8: memref<128x128xf32, #tpu.memory_space<vmem>>, %arg9: memref<8x128xf32, #tpu.memory_space<vmem>>) attributes {dimension_semantics = [#tpu.dimension_semantics<parallel>, #tpu.dimension_semantics<arbitrary>], iteration_bounds = array<i64: 2, 2>, scalar_prefetch = 0 : i64, scratch_operands = 2 : i64, tpu.core_type = #tpu.core_type<tc>, window_params = [{transform_indices = @transform_0, window_bounds = array<i64: 128, 128>}, {transform_indices = @transform_1, window_bounds = array<i64: 128, 128>}, {transform_indices = @transform_2, window_bounds = array<i64: 8, 128>}, {pipeline_mode = #tpu.pipeline_mode<synchronous>, transform_indices = @transform_3, window_bounds = array<i64: 128, 128>}, {pipeline_mode = #tpu.pipeline_mode<synchronous>, transform_indices = @transform_4, window_bounds = array<i64: 1, 128>}, {transform_indices = @transform_5, window_bounds = array<i64: 1, 8, 128>}]} {
    %c0_i32 = arith.constant 0 : i32
    %0 = arith.cmpi eq, %arg1, %c0_i32 : i32
    %1 = arith.extui %0 : i1 to i32
    %c0_i32_0 = arith.constant 0 : i32
    %2 = arith.cmpi ne, %1, %c0_i32_0 : i32
    scf.if %2 {
      %cst_16 = arith.constant 0.000000e+00 : f32
      %17 = vector.broadcast %cst_16 : f32 to vector<128x128xf32>
      %c0_17 = arith.constant 0 : index
      %c0_18 = arith.constant 0 : index
      %18 = vector.load %arg8[%c0_17, %c0_18] : memref<128x128xf32, #tpu.memory_space<vmem>>, vector<128x128xf32>
      tpu.vector_store %arg8[%c0_17, %c0_18], %17 {strides = array<i32>} : memref<128x128xf32, #tpu.memory_space<vmem>>, vector<128x128xf32>,
      %cst_19 = arith.constant 0.000000e+00 : f32
      %19 = vector.broadcast %cst_19 : f32 to vector<8x128xf32>
      %c0_20 = arith.constant 0 : index
      %c0_21 = arith.constant 0 : index
      %20 = vector.load %arg9[%c0_20, %c0_21] : memref<8x128xf32, #tpu.memory_space<vmem>>, vector<8x128xf32>
      tpu.vector_store %arg9[%c0_20, %c0_21], %19 {strides = array<i32>} : memref<8x128xf32, #tpu.memory_space<vmem>>, vector<8x128xf32>,
    } else {
    }
    %c0 = arith.constant 0 : index
    %c0_1 = arith.constant 0 : index
    %3 = vector.load %arg2[%c0, %c0_1] : memref<128x128xbf16, #tpu.memory_space<vmem>>, vector<128x128xbf16>
    %c0_2 = arith.constant 0 : index
    %c0_3 = arith.constant 0 : index
    %4 = vector.load %arg8[%c0_2, %c0_3] : memref<128x128xf32, #tpu.memory_space<vmem>>, vector<128x128xf32>
    %c0_4 = arith.constant 0 : index
    %c0_5 = arith.constant 0 : index
    %5 = vector.load %arg3[%c0_4, %c0_5] : memref<128x128xbf16, #tpu.memory_space<vmem>>, vector<128x128xbf16>
    %cst = arith.constant dense<0.000000e+00> : vector<128x128xf32>
    %6 = tpu.matmul %3, %5, %cst {dimension_numbers = #tpu.dot_dimension_numbers<[1], [0], [0], [1], [0, 0, 1, 1], [], []>} : vector<128x128xbf16>, vector<128x128xbf16>, vector<128x128xf32> -> vector<128x128xf32>
    %7 = arith.addf %4, %6 : vector<128x128xf32>
    %c0_6 = arith.constant 0 : index
    %c0_7 = arith.constant 0 : index
    %8 = vector.load %arg8[%c0_6, %c0_7] : memref<128x128xf32, #tpu.memory_space<vmem>>, vector<128x128xf32>
    tpu.vector_store %arg8[%c0_6, %c0_7], %7 {strides = array<i32>} : memref<128x128xf32, #tpu.memory_space<vmem>>, vector<128x128xf32>,
    %c0_8 = arith.constant 0 : index
    %c0_9 = arith.constant 0 : index
    %9 = vector.load %arg9[%c0_8, %c0_9] : memref<8x128xf32, #tpu.memory_space<vmem>>, vector<8x128xf32>
    %c0_10 = arith.constant 0 : index
    %c0_11 = arith.constant 0 : index
    %10 = vector.load %arg4[%c0_10, %c0_11] : memref<8x128xbf16, #tpu.memory_space<vmem>>, vector<8x128xbf16>
    %cst_12 = arith.constant dense<0.000000e+00> : vector<8x128xf32>
    %11 = tpu.matmul %10, %3, %cst_12 {dimension_numbers = #tpu.dot_dimension_numbers<[1], [1], [0], [0], [0, 0, 1, 0], [], []>} : vector<8x128xbf16>, vector<128x128xbf16>, vector<8x128xf32> -> vector<8x128xf32>
    %12 = arith.addf %9, %11 : vector<8x128xf32>
    %c0_13 = arith.constant 0 : index
    %c0_14 = arith.constant 0 : index
    %13 = vector.load %arg9[%c0_13, %c0_14] : memref<8x128xf32, #tpu.memory_space<vmem>>, vector<8x128xf32>
    tpu.vector_store %arg9[%c0_13, %c0_14], %12 {strides = array<i32>} : memref<8x128xf32, #tpu.memory_space<vmem>>, vector<8x128xf32>,
    %c1_i32 = arith.constant 1 : i32
    %14 = arith.cmpi eq, %arg1, %c1_i32 : i32
    %15 = arith.extui %14 : i1 to i32
    %c0_i32_15 = arith.constant 0 : i32
    %16 = arith.cmpi ne, %15, %c0_i32_15 : i32
    scf.if %16 {
      %c0_16 = arith.constant 0 : index
      %c0_17 = arith.constant 0 : index
      %17 = vector.load %arg8[%c0_16, %c0_17] : memref<128x128xf32, #tpu.memory_space<vmem>>, vector<128x128xf32>
      %18 = arith.truncf %17 : vector<128x128xf32> to vector<128x128xbf16>
      %c0_18 = arith.constant 0 : index
      %c0_19 = arith.constant 0 : index
      %19 = vector.load %arg5[%c0_18, %c0_19] : memref<128x128xbf16, #tpu.memory_space<vmem>>, vector<128x128xbf16>
      %cst_20 = arith.constant dense<0.000000e+00> : vector<128x128xf32>
      %20 = tpu.matmul %18, %19, %cst_20 {dimension_numbers = #tpu.dot_dimension_numbers<[1], [0], [0], [1], [0, 0, 1, 1], [], []>} : vector<128x128xbf16>, vector<128x128xbf16>, vector<128x128xf32> -> vector<128x128xf32>
      %c0_21 = arith.constant 0 : index
      %c0_22 = arith.constant 0 : index
      %21 = vector.load %arg6[%c0_21, %c0_22] : memref<1x128xf32, #tpu.memory_space<vmem>>, vector<1x128xf32>
      %22 = vector.broadcast %21 : vector<1x128xf32> to vector<128x128xf32>
      %23 = arith.addf %20, %22 : vector<128x128xf32>
      %cst_23 = arith.constant 0.000000e+00 : f32
      %24 = vector.broadcast %cst_23 : f32 to vector<128x128xf32>
      %25 = arith.maximumf %23, %24 : vector<128x128xf32>
      %26 = arith.truncf %25 : vector<128x128xf32> to vector<128x128xbf16>
      %c0_24 = arith.constant 0 : index
      %c0_25 = arith.constant 0 : index
      %27 = vector.load %arg9[%c0_24, %c0_25] : memref<8x128xf32, #tpu.memory_space<vmem>>, vector<8x128xf32>
      %28 = arith.truncf %27 : vector<8x128xf32> to vector<8x128xbf16>
      %cst_26 = arith.constant dense<0.000000e+00> : vector<8x128xf32>
      %29 = tpu.matmul %28, %26, %cst_26 {dimension_numbers = #tpu.dot_dimension_numbers<[1], [0], [0], [1], [0, 0, 1, 1], [], []>} : vector<8x128xbf16>, vector<128x128xbf16>, vector<8x128xf32> -> vector<8x128xf32>
      %c0_27 = arith.constant 0 : index
      %c0_28 = arith.constant 0 : index
      %c0_29 = arith.constant 0 : index
      %30 = vector.load %arg7[%c0_27, %c0_28, %c0_29] : memref<1x8x128xf32, #tpu.memory_space<vmem>>, vector<1x8x128xf32>
      %31 = vector.shape_cast %30 : vector<1x8x128xf32> to vector<8x128xf32>
      %32 = vector.shape_cast %29 : vector<8x128xf32> to vector<1x8x128xf32>
      tpu.vector_store %arg7[%c0_27, %c0_28, %c0_29], %32 {strides = array<i32>} : memref<1x8x128xf32, #tpu.memory_space<vmem>>, vector<1x8x128xf32>,
    } else {
    }
    return
  }
  func.func @transform_0(%arg0: i32, %arg1: i32) -> (i32, i32) {
    %c0_i32 = arith.constant 0 : i32
    return %arg0, %arg1 : i32, i32
  }
  func.func @transform_1(%arg0: i32, %arg1: i32) -> (i32, i32) {
    %c0_i32 = arith.constant 0 : i32
    %c0_i32_0 = arith.constant 0 : i32
    return %arg1, %c0_i32 : i32, i32
  }
  func.func @transform_2(%arg0: i32, %arg1: i32) -> (i32, i32) {
    %c0_i32 = arith.constant 0 : i32
    %c0_i32_0 = arith.constant 0 : i32
    return %c0_i32, %arg1 : i32, i32
  }
  func.func @transform_3(%arg0: i32, %arg1: i32) -> (i32, i32) {
    %c0_i32 = arith.constant 0 : i32
    %c0_i32_0 = arith.constant 0 : i32
    %c0_i32_1 = arith.constant 0 : i32
    return %c0_i32, %c0_i32_0 : i32, i32
  }
  func.func @transform_4(%arg0: i32, %arg1: i32) -> (i32, i32) {
    %c0_i32 = arith.constant 0 : i32
    %c0_i32_0 = arith.constant 0 : i32
    %c0_i32_1 = arith.constant 0 : i32
    return %c0_i32, %c0_i32_0 : i32, i32
  }
  func.func @transform_5(%arg0: i32, %arg1: i32) -> (i32, i32, i32) {
    %c0_i32 = arith.constant 0 : i32
    %c0_i32_0 = arith.constant 0 : i32
    %c0_i32_1 = arith.constant 0 : i32
    return %arg0, %c0_i32, %c0_i32_0 : i32, i32, i32
  }
}

</mosaic_0001>

<llo_original>
// kernel: tpu_custom_call.1
$region0: #{tpu_custom_call.1}
  #allocation0 [shape = 'u32[]', space=smem, size = 0x4, offset = 0x4, fixed_abs, tag = 'smem constant byte address 0x4 - core index']
  #allocation1 [shape = 'u32[72,128]{1,0:T(1,128)}', space=vmem, size = 0x9000, scoped, tag = 'internal scratch']
  #allocation2 [shape = 'f32[128,128]{1,0:T(8,128)}', space=vmem, size = 0x10000, scoped, tag = 'scratch operand']
  #allocation3 [shape = 'f32[8,128]{1,0:T(8,128)}', space=vmem, size = 0x1000, scoped, tag = 'scratch operand']
  %s0 = inlined_call_operand.hbm [shape: bf16[256,256], index: 0, kind: input, shape index: {}]
  %s1 = inlined_call_operand.hbm [shape: bf16[256,128], index: 1, kind: input, shape index: {}]
  %s2 = inlined_call_operand.hbm [shape: bf16[8,256], index: 2, kind: input, shape index: {}]
  %s3 = inlined_call_operand.hbm [shape: bf16[128,128], index: 3, kind: input, shape index: {}]
  %s4 = inlined_call_operand.vmem [shape: f32[1,128], index: 4, kind: input, shape index: {}]
  %s5 = inlined_call_operand.hbm [shape: f32[2,8,128], index: 5, kind: output, shape index: {}]
  %s6 = sld [smem:[#allocation0]]
  $region77: #{tpu_custom_call.1} parent=0
    _
  %s8 = ssub.s32 1, %s6
  %s9 = scalar_select 0, %s8, %s6
  $region1: #{tpu_custom_call.1} parent=0
    #allocation4 [shape = 'u8[65536]{0}', space=vmem, size = 0x10000, scoped, tag = 'input window, operand 0']
    #allocation5 [shape = 's32[2]{0}', space=sflag, size = 0x8, scoped, tag = 'scoped memory for tpu_custom_call.1']
    #allocation6 [shape = 's32[2]{0}', space=sflag, size = 0x8, scoped, tag = 'scoped memory for tpu_custom_call.1']
    #allocation7 [shape = 'u8[65536]{0}', space=vmem, size = 0x10000, scoped, tag = 'input window, operand 1']
    #allocation8 [shape = 's32[2]{0}', space=sflag, size = 0x8, scoped, tag = 'scoped memory for tpu_custom_call.1']
    #allocation9 [shape = 'u8[4096]{0}', space=vmem, size = 0x1000, scoped, tag = 'input window, operand 2']
    #allocation10 [shape = 'u8[32768]{0}', space=vmem, size = 0x8000, scoped, tag = 'input window, operand 3, single buffered']
    #allocation11 [shape = 's32[1]{0}', space=sflag, size = 0x4, scoped, tag = 'scoped memory for tpu_custom_call.1']
    #allocation12 [shape = 'u8[8192]{0}', space=vmem, size = 0x2000, scoped, tag = 'output window, operand 0']
    %10 = vsyncpa [#allocation5], 0
    %s11 = scalar_lea.sflag [#allocation5], 1
    %12 = vsyncpa %s11, 0
    %13 = vsyncpa [#allocation8], 0
    %s14 = scalar_lea.sflag [#allocation8], 1
    %15 = vsyncpa %s14, 0
    %16 = vsyncpa [#allocation11], 0
    %17 = vsyncpa [#allocation6], 0
    %s18 = scalar_lea.sflag [#allocation6], 1
    %19 = vsyncpa %s18, 0
    loop: start=0, step=1, limit=6
    $region2: #{tpu_custom_call.1} parent=1 // loop_pre_header
      _
    $region3: #{tpu_custom_call.1} parent=1 // loop_header
      %s21 = sphi 0, %s25
      %p22 = scmp.ge.s32.totalorder %s21, 6
      %s28 = sphi 0, %s40
      %s29 = sphi 0, %s36
      %s30 = sphi 0, %s28
      %s31 = sphi 0, %s29
      %s32 = sphi 0, %s30
      %s33 = sphi 0, %s31
      %s45 = sphi 0, %s47
      %s48 = sphi 0, %s45
      %s49 = sphi 0, %s48
      %s65 = sphi 0, %s49
      %s71 = sphi 0, %s73
      %s74 = sphi 0, %s71
      %s75 = sphi 0, %s74
      %s91 = sphi 0, %s75
      %s97 = sphi 0, %s99
      %s100 = sphi 0, %s97
      %s101 = sphi 0, %s100
      %s117 = sphi 0, %s101
      %s121 = sphi 0, %s121
      %s123 = sphi 0, %s121
      %s124 = sphi 0, %s123
      %s138 = sphi 0, %s124
      %s142 = sphi 0, %s142
      %s144 = sphi 0, %s142
      %s145 = sphi 0, %s144
      %s159 = sphi 0, %s145
      %s165 = sphi 0, %s167
      %s168 = sphi 0, %s165
      %s169 = sphi 0, %s168
      %s185 = sphi 0, %s169
    $region4: #{tpu_custom_call.1} parent=1 // loop_header_branch
      %24 = sbr.rel (%p22) target = $region8
    $region5: #{tpu_custom_call.1} parent=1 // loop_body
      %s26 = ssub.s32 %s21, 1
      %s27 = ssub.s32 %s21, 2
      %s34 = sadd.s32 1, %s29
      %p35 = scmp.ge.s32.totalorder %s34, 2
      %s36 = scalar_select %p35, 0, %s34
      %s37 = sadd.s32 1, %s28
      %s38 = scalar_select %p35, %s37, %s28
      %p39 = scmp.ge.s32.totalorder %s38, 2
      %s40 = scalar_select %p39, 0, %s38
      %s41 = ssub.s32 %s28, %s40
      %s42 = ssub.s32 %s29, %s36
      %s43 = sor.u32 %s41, %s42
      %p44 = scmp.eq.s32.totalorder %s43, 0
      %s46 = sadd.s32 %s45, 1
      %s47 = scalar_select %p44, %s45, %s46
      %p50 = pneg %p44
      %p51 = scmp.eq.s32.totalorder %s21, 3
      %p52 = por %p50, %p51
      %p53 = scmp.ne.s32.totalorder %s45, %s48
      %p54 = scmp.eq.s32.totalorder %s21, 0
      %p55 = por %p53, %p54
      %p56 = scmp.ne.s32.totalorder %s45, %s48
      %p57 = scmp.eq.s32.totalorder %s26, 3
      %p58 = por %p56, %p57
      %p59 = scmp.ne.s32.totalorder %s48, %s49
      %p60 = scmp.eq.s32.totalorder %s26, 0
      %p61 = por %p59, %p60
      %p62 = scmp.ne.s32.totalorder %s48, %s49
      %p63 = scmp.eq.s32.totalorder %s27, 3
      %p64 = por %p62, %p63
      %p66 = scmp.ne.s32.totalorder %s49, %s65
      %p67 = scmp.eq.s32.totalorder %s27, 0
      %p68 = por %p66, %p67
      %s69 = ssub.s32 %s29, %s36
      %p70 = scmp.eq.s32.totalorder %s69, 0
      %s72 = sadd.s32 %s71, 1
      %s73 = scalar_select %p70, %s71, %s72
      %p76 = pneg %p70
      %p77 = scmp.eq.s32.totalorder %s21, 3
      %p78 = por %p76, %p77
      %p79 = scmp.ne.s32.totalorder %s71, %s74
      %p80 = scmp.eq.s32.totalorder %s21, 0
      %p81 = por %p79, %p80
      %p82 = scmp.ne.s32.totalorder %s71, %s74
      %p83 = scmp.eq.s32.totalorder %s26, 3
      %p84 = por %p82, %p83
      %p85 = scmp.ne.s32.totalorder %s74, %s75
      %p86 = scmp.eq.s32.totalorder %s26, 0
      %p87 = por %p85, %p86
      %p88 = scmp.ne.s32.totalorder %s74, %s75
      %p89 = scmp.eq.s32.totalorder %s27, 3
      %p90 = por %p88, %p89
      %p92 = scmp.ne.s32.totalorder %s75, %s91
      %p93 = scmp.eq.s32.totalorder %s27, 0
      %p94 = por %p92, %p93
      %s95 = ssub.s32 %s29, %s36
      %p96 = scmp.eq.s32.totalorder %s95, 0
      %s98 = sadd.s32 %s97, 1
      %s99 = scalar_select %p96, %s97, %s98
      %p102 = pneg %p96
      %p103 = scmp.eq.s32.totalorder %s21, 3
      %p104 = por %p102, %p103
      %p105 = scmp.ne.s32.totalorder %s97, %s100
      %p106 = scmp.eq.s32.totalorder %s21, 0
      %p107 = por %p105, %p106
      %p108 = scmp.ne.s32.totalorder %s97, %s100
      %p109 = scmp.eq.s32.totalorder %s26, 3
      %p110 = por %p108, %p109
      %p111 = scmp.ne.s32.totalorder %s100, %s101
      %p112 = scmp.eq.s32.totalorder %s26, 0
      %p113 = por %p111, %p112
      %p114 = scmp.ne.s32.totalorder %s100, %s101
      %p115 = scmp.eq.s32.totalorder %s27, 3
      %p116 = por %p114, %p115
      %p118 = scmp.ne.s32.totalorder %s101, %s117
      %p119 = scmp.eq.s32.totalorder %s27, 0
      %p120 = por %p118, %p119
      %s122 = sadd.s32 %s121, 1
      %p125 = scmp.eq.s32.totalorder %s21, 3
      %p126 = scmp.ne.s32.totalorder %s121, %s123
      %p127 = scmp.eq.s32.totalorder %s21, 0
      %p128 = por %p126, %p127
      %p129 = scmp.ne.s32.totalorder %s121, %s123
      %p130 = scmp.eq.s32.totalorder %s26, 3
      %p131 = por %p129, %p130
      %p132 = scmp.ne.s32.totalorder %s123, %s124
      %p133 = scmp.eq.s32.totalorder %s26, 0
      %p134 = por %p132, %p133
      %p135 = scmp.ne.s32.totalorder %s123, %s124
      %p136 = scmp.eq.s32.totalorder %s27, 3
      %p137 = por %p135, %p136
      %p139 = scmp.ne.s32.totalorder %s124, %s138
      %p140 = scmp.eq.s32.totalorder %s27, 0
      %p141 = por %p139, %p140
      %s143 = sadd.s32 %s142, 1
      %p146 = scmp.eq.s32.totalorder %s21, 3
      %p147 = scmp.ne.s32.totalorder %s142, %s144
      %p148 = scmp.eq.s32.totalorder %s21, 0
      %p149 = por %p147, %p148
      %p150 = scmp.ne.s32.totalorder %s142, %s144
      %p151 = scmp.eq.s32.totalorder %s26, 3
      %p152 = por %p150, %p151
      %p153 = scmp.ne.s32.totalorder %s144, %s145
      %p154 = scmp.eq.s32.totalorder %s26, 0
      %p155 = por %p153, %p154
      %p156 = scmp.ne.s32.totalorder %s144, %s145
      %p157 = scmp.eq.s32.totalorder %s27, 3
      %p158 = por %p156, %p157
      %p160 = scmp.ne.s32.totalorder %s145, %s159
      %p161 = scmp.eq.s32.totalorder %s27, 0
      %p162 = por %p160, %p161
      %s163 = ssub.s32 %s28, %s40
      %p164 = scmp.eq.s32.totalorder %s163, 0
      %s166 = sadd.s32 %s165, 1
      %s167 = scalar_select %p164, %s165, %s166
      %p170 = pneg %p164
      %p171 = scmp.eq.s32.totalorder %s21, 3
      %p172 = por %p170, %p171
      %p173 = scmp.ne.s32.totalorder %s165, %s168
      %p174 = scmp.eq.s32.totalorder %s21, 0
      %p175 = por %p173, %p174
      %p176 = scmp.ne.s32.totalorder %s165, %s168
      %p177 = scmp.eq.s32.totalorder %s26, 3
      %p178 = por %p176, %p177
      %p179 = scmp.ne.s32.totalorder %s168, %s169
      %p180 = scmp.eq.s32.totalorder %s26, 0
      %p181 = por %p179, %p180
      %p182 = scmp.ne.s32.totalorder %s168, %s169
      %p183 = scmp.eq.s32.totalorder %s27, 3
      %p184 = por %p182, %p183
      %p186 = scmp.ne.s32.totalorder %s169, %s185
      %p187 = scmp.eq.s32.totalorder %s27, 0
      %p188 = por %p186, %p187
      %p189 = scmp.le.s32.totalorder 1, %s21
      %p190 = scmp.lt.s32.totalorder %s21, 5
      %p191 = pnand %p189, %p190
      %p192 = pneg %p191
      // Predicated region
      $region9: #{tpu_custom_call.1} parent=5 // pred_check
        _
      $region10: #{tpu_custom_call.1} parent=5 // pred_check_branch
        %194 = sbr.rel (%p191) target = $region12
      $region11: #{tpu_custom_call.1} parent=5 // pred_region
        %s195 = ssub.s32 %s21, 1
        // Predicated region
        $region13: #{tpu_custom_call.1} parent=11 // pred_check
          %p196 = pneg %p134
        $region14: #{tpu_custom_call.1} parent=11 // pred_check_branch
          %198 = sbr.rel (%p196) target = $region16
        $region15: #{tpu_custom_call.1} parent=11 // pred_region
          %200 = vsyncadd [#allocation11], 0
          %s201 = sshll.u32 %s3, 4
          %s202 = int_to_ptr.hbm [resolvable:$true] %s201
          %s203 = sshll.u32 [#allocation10], 4
          %s204 = int_to_ptr.vmem [resolvable:$true] %s203
          %209 = dma.hbm_to_vmem [thread:$0]  %s202, 1024, %s204, [#allocation11], 64, 64, 4
        $region16: #{tpu_custom_call.1} parent=11 // pred_fallthru
          _
        // Predicated region
        $region17: #{tpu_custom_call.1} parent=11 // pred_check
          %p210 = pneg %p155
        $region18: #{tpu_custom_call.1} parent=11 // pred_check_branch
          %212 = sbr.rel (%p210) target = $region20
        $region19: #{tpu_custom_call.1} parent=11 // pred_region
          _
        $region20: #{tpu_custom_call.1} parent=11 // pred_fallthru
          _
      $region12: #{tpu_custom_call.1} parent=5 // pred_fallthru
        _
      %p213 = scmp.lt.s32.totalorder %s21, 4
      // Predicated region
      $region21: #{tpu_custom_call.1} parent=5 // pred_check
        %p214 = pneg %p213
      $region22: #{tpu_custom_call.1} parent=5 // pred_check_branch
        %216 = sbr.rel (%p214) target = $region24
      $region23: #{tpu_custom_call.1} parent=5 // pred_region
        // Predicated region
        $region25: #{tpu_custom_call.1} parent=23 // pred_check
          %p217 = pneg %p55
        $region26: #{tpu_custom_call.1} parent=23 // pred_check_branch
          %219 = sbr.rel (%p217) target = $region28
        $region27: #{tpu_custom_call.1} parent=23 // pred_region
          %s220 = sand.u32 %s45, 1
          %s221 = scalar_lea.sflag [#allocation5], %s220
          %s222 = sand.u32 %s45, 1
          %s223 = smul.addr %s222, 64
          %s224 = scalar_lea.vmem [#allocation4], %s223
          %s225 = smul.u32 16, %s28
          %227 = vsyncadd %s221, 0
          %s228 = smul.addr %s225, 2
          %s229 = sadd.s32 %s29, %s228
          %s230 = smul.addr %s229, 4
          %s231 = scalar_lea.hbm %s0, %s230
          %s232 = sshll.u32 %s231, 4
          %s233 = int_to_ptr.hbm [resolvable:$true] %s232
          %s234 = sshll.u32 %s224, 4
          %s235 = int_to_ptr.vmem [resolvable:$true] %s234
          %240 = dma.hbm_to_vmem [thread:$0]  %s233, 1024, %s235, %s221, 128, 64, 4
        $region28: #{tpu_custom_call.1} parent=23 // pred_fallthru
          _
        // Predicated region
        $region29: #{tpu_custom_call.1} parent=23 // pred_check
          %p241 = pneg %p81
        $region30: #{tpu_custom_call.1} parent=23 // pred_check_branch
          %243 = sbr.rel (%p241) target = $region32
        $region31: #{tpu_custom_call.1} parent=23 // pred_region
          %s244 = sand.u32 %s21, 1
          %s245 = scalar_lea.sflag [#allocation8], %s244
          %s246 = sand.u32 %s71, 1
          %s247 = smul.addr %s246, 64
          %s248 = scalar_lea.vmem [#allocation7], %s247
          %s249 = smul.u32 16, %s29
          %251 = vsyncadd %s245, 0
          %s252 = smul.addr %s249, 4
          %s253 = scalar_lea.hbm %s1, %s252
          %s254 = sshll.u32 %s253, 4
          %s255 = int_to_ptr.hbm [resolvable:$true] %s254
          %s256 = sshll.u32 %s248, 4
          %s257 = int_to_ptr.vmem [resolvable:$true] %s256
          %262 = dma.hbm_to_vmem [thread:$0]  %s255, 1024, %s257, %s245, 64, 64, 4
        $region32: #{tpu_custom_call.1} parent=23 // pred_fallthru
          _
        // Predicated region
        $region33: #{tpu_custom_call.1} parent=23 // pred_check
          %p263 = pneg %p107
        $region34: #{tpu_custom_call.1} parent=23 // pred_check_branch
          %265 = sbr.rel (%p263) target = $region36
        $region35: #{tpu_custom_call.1} parent=23 // pred_region
          %s266 = sand.u32 %s21, 1
          %s267 = scalar_lea.sflag [#allocation8], %s266
          %s268 = sand.u32 %s97, 1
          %s269 = smul.addr %s268, 4
          %s270 = scalar_lea.vmem [#allocation9], %s269
          %272 = vsyncadd %s267, 0
          %s273 = smul.addr %s29, 4
          %s274 = scalar_lea.hbm %s2, %s273
          %s276 = sshll.u32 %s274, 4
          %s277 = int_to_ptr.hbm [resolvable:$true] %s276
          %s278 = sshll.u32 %s270, 4
          %s279 = int_to_ptr.vmem [resolvable:$true] %s278
          %281 = dma.hbm_to_vmem [thread:$0]  %s277, 64, %s279, %s267
        $region36: #{tpu_custom_call.1} parent=23 // pred_fallthru
          _
      $region24: #{tpu_custom_call.1} parent=5 // pred_fallthru
        _
      %p282 = scmp.le.s32.totalorder 1, %s21
      %p283 = scmp.lt.s32.totalorder %s21, 5
      %p284 = pnand %p282, %p283
      %p285 = pneg %p284
      // Predicated region
      $region37: #{tpu_custom_call.1} parent=5 // pred_check
        _
      $region38: #{tpu_custom_call.1} parent=5 // pred_check_branch
        %287 = sbr.rel (%p284) target = $region40
      $region39: #{tpu_custom_call.1} parent=5 // pred_region
        %s288 = ssub.s32 %s21, 1
        %s289 = sand.u32 %s48, 1
        %s290 = scalar_lea.sflag [#allocation5], %s289
        %s291 = sand.u32 %s48, 1
        %s292 = smul.addr %s291, 64
        %s293 = scalar_lea.vmem [#allocation4], %s292
        // Predicated region
        $region41: #{tpu_custom_call.1} parent=39 // pred_check
          %p294 = pneg %p61
        $region42: #{tpu_custom_call.1} parent=39 // pred_check_branch
          %296 = sbr.rel (%p294) target = $region44
        $region43: #{tpu_custom_call.1} parent=39 // pred_region
          %298 = dma.done %s290, 1024
        $region44: #{tpu_custom_call.1} parent=39 // pred_fallthru
          _
        %s299 = sand.u32 %s26, 1
        %s300 = scalar_lea.sflag [#allocation8], %s299
        %s301 = sand.u32 %s74, 1
        %s302 = smul.addr %s301, 64
        %s303 = scalar_lea.vmem [#allocation7], %s302
        // Predicated region
        $region45: #{tpu_custom_call.1} parent=39 // pred_check
          %p304 = pneg %p87
        $region46: #{tpu_custom_call.1} parent=39 // pred_check_branch
          %306 = sbr.rel (%p304) target = $region48
        $region47: #{tpu_custom_call.1} parent=39 // pred_region
          %308 = dma.done %s300, 1024
        $region48: #{tpu_custom_call.1} parent=39 // pred_fallthru
          _
        %s309 = sand.u32 %s26, 1
        %s310 = scalar_lea.sflag [#allocation8], %s309
        %s311 = sand.u32 %s100, 1
        %s312 = smul.addr %s311, 4
        %s313 = scalar_lea.vmem [#allocation9], %s312
        // Predicated region
        $region49: #{tpu_custom_call.1} parent=39 // pred_check
          %p314 = pneg %p113
        $region50: #{tpu_custom_call.1} parent=39 // pred_check_branch
          %316 = sbr.rel (%p314) target = $region52
        $region51: #{tpu_custom_call.1} parent=39 // pred_region
          %318 = dma.done %s310, 64
        $region52: #{tpu_custom_call.1} parent=39 // pred_fallthru
          _
        // Predicated region
        $region53: #{tpu_custom_call.1} parent=39 // pred_check
          %p319 = pneg %p134
        $region54: #{tpu_custom_call.1} parent=39 // pred_check_branch
          %321 = sbr.rel (%p319) target = $region56
        $region55: #{tpu_custom_call.1} parent=39 // pred_region
          %323 = dma.done [#allocation11], 1024
        $region56: #{tpu_custom_call.1} parent=39 // pred_fallthru
          _
        %s324 = sand.u32 %s48, 1
        %s325 = scalar_lea.sflag [#allocation5], %s324
        %s326 = sand.u32 %s48, 1
        %s327 = smul.addr %s326, 64
        %s328 = scalar_lea.vmem [#allocation4], %s327
        %p329 = pneg %p61
        %p330 = pneg %p58
        %s331 = sand.u32 %s26, 1
        %s332 = scalar_lea.sflag [#allocation8], %s331
        %s333 = sand.u32 %s74, 1
        %s334 = smul.addr %s333, 64
        %s335 = scalar_lea.vmem [#allocation7], %s334
        %p336 = pneg %p87
        %p337 = pneg %p84
        %s338 = sand.u32 %s26, 1
        %s339 = scalar_lea.sflag [#allocation8], %s338
        %s340 = sand.u32 %s100, 1
        %s341 = smul.addr %s340, 4
        %s342 = scalar_lea.vmem [#allocation9], %s341
        %p343 = pneg %p113
        %p344 = pneg %p110
        %p345 = pneg %p134
        %p346 = pneg %p131
        %p347 = pneg %p155
        %p348 = pneg %p152
        %p349 = pneg %p181
        %p350 = pneg %p178
        %s351 = sand.u32 %s168, 1
        %s352 = scalar_lea.sflag [#allocation6], %s351
        %s353 = sand.u32 %s168, 1
        %s354 = smul.addr %s353, 8
        %s355 = scalar_lea.vmem [#allocation12], %s354
        %s356 = smul.u32 16, %s30
        %s357 = smul.u32 16, %s31
        %p358 = scmp.eq.s32.totalorder %s31, 0
        // Predicated region
        $region57: #{tpu_custom_call.1} parent=39 // pred_check
          %p359 = pneg %p358
        $region58: #{tpu_custom_call.1} parent=39 // pred_check_branch
          %361 = sbr.rel (%p359) target = $region60
        $region59: #{tpu_custom_call.1} parent=39 // pred_region
          %362 = vst [vmem:[#allocation2] sm:$0xff] 0.0
          %363 = vst [vmem:[#allocation2 + $0x8] sm:$0xff] 0.0
          %364 = vst [vmem:[#allocation2 + $0x10] sm:$0xff] 0.0
          %365 = vst [vmem:[#allocation2 + $0x18] sm:$0xff] 0.0
          %366 = vst [vmem:[#allocation2 + $0x20] sm:$0xff] 0.0
          %367 = vst [vmem:[#allocation2 + $0x28] sm:$0xff] 0.0
          %368 = vst [vmem:[#allocation2 + $0x30] sm:$0xff] 0.0
          %369 = vst [vmem:[#allocation2 + $0x38] sm:$0xff] 0.0
          %370 = vst [vmem:[#allocation2 + $0x40] sm:$0xff] 0.0
          %371 = vst [vmem:[#allocation2 + $0x48] sm:$0xff] 0.0
          %372 = vst [vmem:[#allocation2 + $0x50] sm:$0xff] 0.0
          %373 = vst [vmem:[#allocation2 + $0x58] sm:$0xff] 0.0
          %374 = vst [vmem:[#allocation2 + $0x60] sm:$0xff] 0.0
          %375 = vst [vmem:[#allocation2 + $0x68] sm:$0xff] 0.0
          %376 = vst [vmem:[#allocation2 + $0x70] sm:$0xff] 0.0
          %377 = vst [vmem:[#allocation2 + $0x78] sm:$0xff] 0.0
          %378 = vst [vmem:[#allocation3] sm:$0xff] 0.0
        $region60: #{tpu_custom_call.1} parent=39 // pred_fallthru
          _
        %v379 = vld [vmem:[%s293] sm:$0xf]
        %v380 = vld [vmem:[%s293 + $0x4] sm:$0xf]
        %v381 = vld [vmem:[%s293 + $0x8] sm:$0xf]
        %v382 = vld [vmem:[%s293 + $0xc] sm:$0xf]
        %v383 = vld [vmem:[%s293 + $0x10] sm:$0xf]
        %v384 = vld [vmem:[%s293 + $0x14] sm:$0xf]
        %v385 = vld [vmem:[%s293 + $0x18] sm:$0xf]
        %v386 = vld [vmem:[%s293 + $0x1c] sm:$0xf]
        %v387 = vld [vmem:[%s293 + $0x20] sm:$0xf]
        %v388 = vld [vmem:[%s293 + $0x24] sm:$0xf]
        %v389 = vld [vmem:[%s293 + $0x28] sm:$0xf]
        %v390 = vld [vmem:[%s293 + $0x2c] sm:$0xf]
        %v391 = vld [vmem:[%s293 + $0x30] sm:$0xf]
        %v392 = vld [vmem:[%s293 + $0x34] sm:$0xf]
        %v393 = vld [vmem:[%s293 + $0x38] sm:$0xf]
        %v394 = vld [vmem:[%s293 + $0x3c] sm:$0xf]
        %v395 = vld [vmem:[#allocation2] sm:$0xff]
        %v396 = vld [vmem:[#allocation2 + $0x8] sm:$0xff]
        %v397 = vld [vmem:[#allocation2 + $0x10] sm:$0xff]
        %v398 = vld [vmem:[#allocation2 + $0x18] sm:$0xff]
        %v399 = vld [vmem:[#allocation2 + $0x20] sm:$0xff]
        %v400 = vld [vmem:[#allocation2 + $0x28] sm:$0xff]
        %v401 = vld [vmem:[#allocation2 + $0x30] sm:$0xff]
        %v402 = vld [vmem:[#allocation2 + $0x38] sm:$0xff]
        %v403 = vld [vmem:[#allocation2 + $0x40] sm:$0xff]
        %v404 = vld [vmem:[#allocation2 + $0x48] sm:$0xff]
        %v405 = vld [vmem:[#allocation2 + $0x50] sm:$0xff]
        %v406 = vld [vmem:[#allocation2 + $0x58] sm:$0xff]
        %v407 = vld [vmem:[#allocation2 + $0x60] sm:$0xff]
        %v408 = vld [vmem:[#allocation2 + $0x68] sm:$0xff]
        %v409 = vld [vmem:[#allocation2 + $0x70] sm:$0xff]
        %v410 = vld [vmem:[#allocation2 + $0x78] sm:$0xff]
        %v411 = vld [vmem:[%s303] sm:$0xf]
        %v412 = vld [vmem:[%s303 + $0x4] sm:$0xf]
        %v413 = vld [vmem:[%s303 + $0x8] sm:$0xf]
        %v414 = vld [vmem:[%s303 + $0xc] sm:$0xf]
        %v415 = vld [vmem:[%s303 + $0x10] sm:$0xf]
        %v416 = vld [vmem:[%s303 + $0x14] sm:$0xf]
        %v417 = vld [vmem:[%s303 + $0x18] sm:$0xf]
        %v418 = vld [vmem:[%s303 + $0x1c] sm:$0xf]
        %v419 = vld [vmem:[%s303 + $0x20] sm:$0xf]
        %v420 = vld [vmem:[%s303 + $0x24] sm:$0xf]
        %v421 = vld [vmem:[%s303 + $0x28] sm:$0xf]
        %v422 = vld [vmem:[%s303 + $0x2c] sm:$0xf]
        %v423 = vld [vmem:[%s303 + $0x30] sm:$0xf]
        %v424 = vld [vmem:[%s303 + $0x34] sm:$0xf]
        %v425 = vld [vmem:[%s303 + $0x38] sm:$0xf]
        %v426 = vld [vmem:[%s303 + $0x3c] sm:$0xf]
        %v443 = vunpack.c.l.b16 %v379
        %v444 = vunpack.c.l.b16 %v380
        %v445 = vunpack.c.l.b16 %v381
        %v446 = vunpack.c.l.b16 %v382
        %v447 = vunpack.c.l.b16 %v383
        %v448 = vunpack.c.l.b16 %v384
        %v449 = vunpack.c.l.b16 %v385
        %v450 = vunpack.c.l.b16 %v386
        %v451 = vunpack.c.l.b16 %v387
        %v452 = vunpack.c.l.b16 %v388
        %v453 = vunpack.c.l.b16 %v389
        %v454 = vunpack.c.l.b16 %v390
        %v455 = vunpack.c.l.b16 %v391
        %v456 = vunpack.c.l.b16 %v392
        %v457 = vunpack.c.l.b16 %v393
        %v458 = vunpack.c.l.b16 %v394
        %v459 = vpack.c.b16 %v444, %v443
        %v460 = vpack.c.b16 %v446, %v445
        %v461 = vpack.c.b16 %v448, %v447
        %v462 = vpack.c.b16 %v450, %v449
        %v463 = vpack.c.b16 %v452, %v451
        %v464 = vpack.c.b16 %v454, %v453
        %v465 = vpack.c.b16 %v456, %v455
        %v466 = vpack.c.b16 %v458, %v457
        %v491 = vunpack.c.l.b16 %v411
        %v492 = vunpack.c.l.b16 %v412
        %v493 = vunpack.c.l.b16 %v413
        %v494 = vunpack.c.l.b16 %v414
        %v495 = vunpack.c.l.b16 %v415
        %v496 = vunpack.c.l.b16 %v416
        %v497 = vunpack.c.l.b16 %v417
        %v498 = vunpack.c.l.b16 %v418
        %v499 = vunpack.c.l.b16 %v419
        %v500 = vunpack.c.l.b16 %v420
        %v501 = vunpack.c.l.b16 %v421
        %v502 = vunpack.c.l.b16 %v422
        %v503 = vunpack.c.l.b16 %v423
        %v504 = vunpack.c.l.b16 %v424
        %v505 = vunpack.c.l.b16 %v425
        %v506 = vunpack.c.l.b16 %v426
        %v507 = vpack.c.b16 %v492, %v491
        %v508 = vpack.c.b16 %v494, %v493
        %v509 = vpack.c.b16 %v496, %v495
        %v510 = vpack.c.b16 %v498, %v497
        %v511 = vpack.c.b16 %v500, %v499
        %v512 = vpack.c.b16 %v502, %v501
        %v513 = vpack.c.b16 %v504, %v503
        %v514 = vpack.c.b16 %v506, %v505
        %523 = vmatpush.bf16.msra.mxu0 %v514
        %524 = vmatpush.bf16.msra.mxu0 %v513
        %525 = vmatpush.bf16.msra.mxu0 %v512
        %526 = vmatpush.bf16.msra.mxu0 %v511
        %527 = vmatpush.bf16.msra.mxu0 %v510
        %528 = vmatpush.bf16.msra.mxu0 %v509
        %529 = vmatpush.bf16.msra.mxu0 %v508
        %530 = vmatpush.bf16.msra.mxu0 %v507
        %531 = vmatmul.bf16.gmra.mxu0 %v459
        %v532 = vpop.f32.mrf.mxu0
        %v533 = vadd.f32 0.0, %v532
        %v534 = vpop.f32.mrf.mxu0
        %v535 = vadd.f32 0.0, %v534
        %536 = vmatmul.bf16.gmra.mxu0 %v460
        %v537 = vpop.f32.mrf.mxu0
        %v538 = vadd.f32 0.0, %v537
        %v539 = vpop.f32.mrf.mxu0
        %v540 = vadd.f32 0.0, %v539
        %541 = vmatmul.bf16.gmra.mxu0 %v461
        %v542 = vpop.f32.mrf.mxu0
        %v543 = vadd.f32 0.0, %v542
        %v544 = vpop.f32.mrf.mxu0
        %v545 = vadd.f32 0.0, %v544
        %546 = vmatmul.bf16.gmra.mxu0 %v462
        %v547 = vpop.f32.mrf.mxu0
        %v548 = vadd.f32 0.0, %v547
        %v549 = vpop.f32.mrf.mxu0
        %v550 = vadd.f32 0.0, %v549
        %551 = vmatmul.bf16.gmra.mxu0 %v463
        %v552 = vpop.f32.mrf.mxu0
        %v553 = vadd.f32 0.0, %v552
        %v554 = vpop.f32.mrf.mxu0
        %v555 = vadd.f32 0.0, %v554
        %556 = vmatmul.bf16.gmra.mxu0 %v464
        %v557 = vpop.f32.mrf.mxu0
        %v558 = vadd.f32 0.0, %v557
        %v559 = vpop.f32.mrf.mxu0
        %v560 = vadd.f32 0.0, %v559
        %561 = vmatmul.bf16.gmra.mxu0 %v465
        %v562 = vpop.f32.mrf.mxu0
        %v563 = vadd.f32 0.0, %v562
        %v564 = vpop.f32.mrf.mxu0
        %v565 = vadd.f32 0.0, %v564
        %566 = vmatmul.bf16.gmra.mxu0 %v466
        %v567 = vpop.f32.mrf.mxu0
        %v568 = vadd.f32 0.0, %v567
        %v569 = vpop.f32.mrf.mxu0
        %v570 = vadd.f32 0.0, %v569
        %571 = vdwg.mxu0
        %v572 = vadd.f32 %v395, %v533
        %v573 = vadd.f32 %v396, %v535
        %v574 = vadd.f32 %v397, %v538
        %v575 = vadd.f32 %v398, %v540
        %v576 = vadd.f32 %v399, %v543
        %v577 = vadd.f32 %v400, %v545
        %v578 = vadd.f32 %v401, %v548
        %v579 = vadd.f32 %v402, %v550
        %v580 = vadd.f32 %v403, %v553
        %v581 = vadd.f32 %v404, %v555
        %v582 = vadd.f32 %v405, %v558
        %v583 = vadd.f32 %v406, %v560
        %v584 = vadd.f32 %v407, %v563
        %v585 = vadd.f32 %v408, %v565
        %v586 = vadd.f32 %v409, %v568
        %v587 = vadd.f32 %v410, %v570
        %588 = vst [vmem:[#allocation2] sm:$0xff] %v572
        %589 = vst [vmem:[#allocation2 + $0x8] sm:$0xff] %v573
        %590 = vst [vmem:[#allocation2 + $0x10] sm:$0xff] %v574
        %591 = vst [vmem:[#allocation2 + $0x18] sm:$0xff] %v575
        %592 = vst [vmem:[#allocation2 + $0x20] sm:$0xff] %v576
        %593 = vst [vmem:[#allocation2 + $0x28] sm:$0xff] %v577
        %594 = vst [vmem:[#allocation2 + $0x30] sm:$0xff] %v578
        %595 = vst [vmem:[#allocation2 + $0x38] sm:$0xff] %v579
        %596 = vst [vmem:[#allocation2 + $0x40] sm:$0xff] %v580
        %597 = vst [vmem:[#allocation2 + $0x48] sm:$0xff] %v581
        %598 = vst [vmem:[#allocation2 + $0x50] sm:$0xff] %v582
        %599 = vst [vmem:[#allocation2 + $0x58] sm:$0xff] %v583
        %600 = vst [vmem:[#allocation2 + $0x60] sm:$0xff] %v584
        %601 = vst [vmem:[#allocation2 + $0x68] sm:$0xff] %v585
        %602 = vst [vmem:[#allocation2 + $0x70] sm:$0xff] %v586
        %603 = vst [vmem:[#allocation2 + $0x78] sm:$0xff] %v587
        %v604 = vld [vmem:[#allocation3] sm:$0xff]
        %v605 = vld [vmem:[%s313] sm:$0xf]
        %606 = vmatpush.bf16.xpose.msra.mxu0 %v466
        %607 = vmatpush.bf16.xpose.msra.mxu0 %v465
        %608 = vmatpush.bf16.xpose.msra.mxu0 %v464
        %609 = vmatpush.bf16.xpose.msra.mxu0 %v463
        %610 = vmatpush.bf16.xpose.msra.mxu0 %v462
        %611 = vmatpush.bf16.xpose.msra.mxu0 %v461
        %612 = vmatpush.bf16.xpose.msra.mxu0 %v460
        %613 = vmatpush.bf16.xpose.msra.mxu0 %v459
        %614 = vmatmul.bf16.gmra.mxu0 %v605
        %v615 = vpop.f32.mrf.mxu0
        %v616 = vadd.f32 0.0, %v615
        %v617 = vpop.f32.mrf.mxu0
        %618 = vdwg.mxu0
        %v619 = vadd.f32 %v604, %v616
        %620 = vst [vmem:[#allocation3] sm:$0xff] %v619
        %p621 = scmp.eq.s32.totalorder %s31, 1
        // Predicated region
        $region61: #{tpu_custom_call.1} parent=39 // pred_check
          %p622 = pneg %p621
        $region62: #{tpu_custom_call.1} parent=39 // pred_check_branch
          %624 = sbr.rel (%p622) target = $region64
        $region63: #{tpu_custom_call.1} parent=39 // pred_region
          %v625 = vld [vmem:[#allocation2] sm:$0xff]
          %v626 = vld [vmem:[#allocation2 + $0x8] sm:$0xff]
          %v627 = vld [vmem:[#allocation2 + $0x10] sm:$0xff]
          %v628 = vld [vmem:[#allocation2 + $0x18] sm:$0xff]
          %v629 = vld [vmem:[#allocation2 + $0x20] sm:$0xff]
          %v630 = vld [vmem:[#allocation2 + $0x28] sm:$0xff]
          %v631 = vld [vmem:[#allocation2 + $0x30] sm:$0xff]
          %v632 = vld [vmem:[#allocation2 + $0x38] sm:$0xff]
          %v633 = vld [vmem:[#allocation2 + $0x40] sm:$0xff]
          %v634 = vld [vmem:[#allocation2 + $0x48] sm:$0xff]
          %v635 = vld [vmem:[#allocation2 + $0x50] sm:$0xff]
          %v636 = vld [vmem:[#allocation2 + $0x58] sm:$0xff]
          %v637 = vld [vmem:[#allocation2 + $0x60] sm:$0xff]
          %v638 = vld [vmem:[#allocation2 + $0x68] sm:$0xff]
          %v639 = vld [vmem:[#allocation2 + $0x70] sm:$0xff]
          %v640 = vld [vmem:[#allocation2 + $0x78] sm:$0xff]
          %v641 = vpack.c.bf16 %v626, %v625
          %v642 = vpack.c.bf16 %v628, %v627
          %v643 = vpack.c.bf16 %v630, %v629
          %v644 = vpack.c.bf16 %v632, %v631
          %v645 = vpack.c.bf16 %v634, %v633
          %v646 = vpack.c.bf16 %v636, %v635
          %v647 = vpack.c.bf16 %v638, %v637
          %v648 = vpack.c.bf16 %v640, %v639
          %v649 = vld [vmem:[#allocation10] sm:$0xf]
          %v650 = vld [vmem:[#allocation10 + $0x4] sm:$0xf]
          %v651 = vld [vmem:[#allocation10 + $0x8] sm:$0xf]
          %v652 = vld [vmem:[#allocation10 + $0xc] sm:$0xf]
          %v653 = vld [vmem:[#allocation10 + $0x10] sm:$0xf]
          %v654 = vld [vmem:[#allocation10 + $0x14] sm:$0xf]
          %v655 = vld [vmem:[#allocation10 + $0x18] sm:$0xf]
          %v656 = vld [vmem:[#allocation10 + $0x1c] sm:$0xf]
          %v657 = vld [vmem:[#allocation10 + $0x20] sm:$0xf]
          %v658 = vld [vmem:[#allocation10 + $0x24] sm:$0xf]
          %v659 = vld [vmem:[#allocation10 + $0x28] sm:$0xf]
          %v660 = vld [vmem:[#allocation10 + $0x2c] sm:$0xf]
          %v661 = vld [vmem:[#allocation10 + $0x30] sm:$0xf]
          %v662 = vld [vmem:[#allocation10 + $0x34] sm:$0xf]
          %v663 = vld [vmem:[#allocation10 + $0x38] sm:$0xf]
          %v664 = vld [vmem:[#allocation10 + $0x3c] sm:$0xf]
          %v665 = vld [vmem:[%s4] sm:$0x1]
          %v667 = vperm.slane %v665, 0
          %v685 = vunpack.c.l.b16 %v649
          %v686 = vunpack.c.l.b16 %v650
          %v687 = vunpack.c.l.b16 %v651
          %v688 = vunpack.c.l.b16 %v652
          %v689 = vunpack.c.l.b16 %v653
          %v690 = vunpack.c.l.b16 %v654
          %v691 = vunpack.c.l.b16 %v655
          %v692 = vunpack.c.l.b16 %v656
          %v693 = vunpack.c.l.b16 %v657
          %v694 = vunpack.c.l.b16 %v658
          %v695 = vunpack.c.l.b16 %v659
          %v696 = vunpack.c.l.b16 %v660
          %v697 = vunpack.c.l.b16 %v661
          %v698 = vunpack.c.l.b16 %v662
          %v699 = vunpack.c.l.b16 %v663
          %v700 = vunpack.c.l.b16 %v664
          %v701 = vpack.c.b16 %v686, %v685
          %v702 = vpack.c.b16 %v688, %v687
          %v703 = vpack.c.b16 %v690, %v689
          %v704 = vpack.c.b16 %v692, %v691
          %v705 = vpack.c.b16 %v694, %v693
          %v706 = vpack.c.b16 %v696, %v695
          %v707 = vpack.c.b16 %v698, %v697
          %v708 = vpack.c.b16 %v700, %v699
          %717 = vmatpush.bf16.msra.mxu0 %v708
          %718 = vmatpush.bf16.msra.mxu0 %v707
          %719 = vmatpush.bf16.msra.mxu0 %v706
          %720 = vmatpush.bf16.msra.mxu0 %v705
          %721 = vmatpush.bf16.msra.mxu0 %v704
          %722 = vmatpush.bf16.msra.mxu0 %v703
          %723 = vmatpush.bf16.msra.mxu0 %v702
          %724 = vmatpush.bf16.msra.mxu0 %v701
          %725 = vmatmul.bf16.gmra.mxu0 %v641
          %v726 = vpop.f32.mrf.mxu0
          %v727 = vadd.f32 %v667, %v726
          %v728 = vpop.f32.mrf.mxu0
          %v729 = vadd.f32 %v667, %v728
          %730 = vmatmul.bf16.gmra.mxu0 %v642
          %v731 = vpop.f32.mrf.mxu0
          %v732 = vadd.f32 %v667, %v731
          %v733 = vpop.f32.mrf.mxu0
          %v734 = vadd.f32 %v667, %v733
          %735 = vmatmul.bf16.gmra.mxu0 %v643
          %v736 = vpop.f32.mrf.mxu0
          %v737 = vadd.f32 %v667, %v736
          %v738 = vpop.f32.mrf.mxu0
          %v739 = vadd.f32 %v667, %v738
          %740 = vmatmul.bf16.gmra.mxu0 %v644
          %v741 = vpop.f32.mrf.mxu0
          %v742 = vadd.f32 %v667, %v741
          %v743 = vpop.f32.mrf.mxu0
          %v744 = vadd.f32 %v667, %v743
          %745 = vmatmul.bf16.gmra.mxu0 %v645
          %v746 = vpop.f32.mrf.mxu0
          %v747 = vadd.f32 %v667, %v746
          %v748 = vpop.f32.mrf.mxu0
          %v749 = vadd.f32 %v667, %v748
          %750 = vmatmul.bf16.gmra.mxu0 %v646
          %v751 = vpop.f32.mrf.mxu0
          %v752 = vadd.f32 %v667, %v751
          %v753 = vpop.f32.mrf.mxu0
          %v754 = vadd.f32 %v667, %v753
          %755 = vmatmul.bf16.gmra.mxu0 %v647
          %v756 = vpop.f32.mrf.mxu0
          %v757 = vadd.f32 %v667, %v756
          %v758 = vpop.f32.mrf.mxu0
          %v759 = vadd.f32 %v667, %v758
          %760 = vmatmul.bf16.gmra.mxu0 %v648
          %v761 = vpop.f32.mrf.mxu0
          %v762 = vadd.f32 %v667, %v761
          %v763 = vpop.f32.mrf.mxu0
          %v764 = vadd.f32 %v667, %v763
          %765 = vdwg.mxu0
          %v766 = vmax.f32 %v727, 0.0
          %v767 = vmax.f32 %v729, 0.0
          %v768 = vmax.f32 %v732, 0.0
          %v769 = vmax.f32 %v734, 0.0
          %v770 = vmax.f32 %v737, 0.0
          %v771 = vmax.f32 %v739, 0.0
          %v772 = vmax.f32 %v742, 0.0
          %v773 = vmax.f32 %v744, 0.0
          %v774 = vmax.f32 %v747, 0.0
          %v775 = vmax.f32 %v749, 0.0
          %v776 = vmax.f32 %v752, 0.0
          %v777 = vmax.f32 %v754, 0.0
          %v778 = vmax.f32 %v757, 0.0
          %v779 = vmax.f32 %v759, 0.0
          %v780 = vmax.f32 %v762, 0.0
          %v781 = vmax.f32 %v764, 0.0
          %v782 = vpack.c.bf16 %v767, %v766
          %v783 = vpack.c.bf16 %v769, %v768
          %v784 = vpack.c.bf16 %v771, %v770
          %v785 = vpack.c.bf16 %v773, %v772
          %v786 = vpack.c.bf16 %v775, %v774
          %v787 = vpack.c.bf16 %v777, %v776
          %v788 = vpack.c.bf16 %v779, %v778
          %v789 = vpack.c.bf16 %v781, %v780
          %v790 = vld [vmem:[#allocation3] sm:$0xff]
          %v791 = vpack.c.bf16 %v790, %v790
          %792 = vmatpush.bf16.msra.mxu0 %v789
          %793 = vmatpush.bf16.msra.mxu0 %v788
          %794 = vmatpush.bf16.msra.mxu0 %v787
          %795 = vmatpush.bf16.msra.mxu0 %v786
          %796 = vmatpush.bf16.msra.mxu0 %v785
          %797 = vmatpush.bf16.msra.mxu0 %v784
          %798 = vmatpush.bf16.msra.mxu0 %v783
          %799 = vmatpush.bf16.msra.mxu0 %v782
          %800 = vmatmul.bf16.gmra.mxu0 %v791
          %v801 = vpop.f32.mrf.mxu0
          %v802 = vadd.f32 0.0, %v801
          %v803 = vpop.f32.mrf.mxu0
          %804 = vdwg.mxu0
          %805 = vst [vmem:[%s355] sm:$0xff] %v802
        $region64: #{tpu_custom_call.1} parent=39 // pred_fallthru
          _
        %s806 = sand.u32 %s168, 1
        %s807 = scalar_lea.sflag [#allocation6], %s806
        %s808 = sand.u32 %s168, 1
        %s809 = smul.addr %s808, 8
        %s810 = scalar_lea.vmem [#allocation12], %s809
        // Predicated region
        $region65: #{tpu_custom_call.1} parent=39 // pred_check
          %p811 = pneg %p178
        $region66: #{tpu_custom_call.1} parent=39 // pred_check_branch
          %813 = sbr.rel (%p811) target = $region68
        $region67: #{tpu_custom_call.1} parent=39 // pred_region
          %815 = vsyncadd %s807, 0
          %s816 = smul.addr %s30, 8
          %s817 = scalar_lea.hbm %s5, %s816
          %s819 = sshll.u32 %s810, 4
          %s820 = int_to_ptr.vmem [resolvable:$true] %s819
          %s821 = sshll.u32 %s817, 4
          %s822 = int_to_ptr.hbm [resolvable:$true] %s821
          %824 = dma.vmem_to_hbm [thread:$0]  %s820, 128, %s822, %s807
        $region68: #{tpu_custom_call.1} parent=39 // pred_fallthru
          _
      $region40: #{tpu_custom_call.1} parent=5 // pred_fallthru
        _
      %p825 = scmp.le.s32.totalorder 2, %s21
      // Predicated region
      $region69: #{tpu_custom_call.1} parent=5 // pred_check
        %p826 = pneg %p825
      $region70: #{tpu_custom_call.1} parent=5 // pred_check_branch
        %828 = sbr.rel (%p826) target = $region72
      $region71: #{tpu_custom_call.1} parent=5 // pred_region
        %s829 = ssub.s32 %s21, 2
        // Predicated region
        $region73: #{tpu_custom_call.1} parent=71 // pred_check
          %p830 = pneg %p184
        $region74: #{tpu_custom_call.1} parent=71 // pred_check_branch
          %832 = sbr.rel (%p830) target = $region76
        $region75: #{tpu_custom_call.1} parent=71 // pred_region
          %s833 = sand.u32 %s169, 1
          %s834 = scalar_lea.sflag [#allocation6], %s833
          %s835 = sand.u32 %s169, 1
          %s836 = smul.addr %s835, 8
          %s837 = scalar_lea.vmem [#allocation12], %s836
          %839 = dma.done %s834, 128
        $region76: #{tpu_custom_call.1} parent=71 // pred_fallthru
          _
      $region72: #{tpu_custom_call.1} parent=5 // pred_fallthru
        _
    $region6: #{tpu_custom_call.1} parent=1 // loop_footer
      %s25 = sadd.s32 1, %s21
    $region7: #{tpu_custom_call.1} parent=1 // loop_footer_branch
      %20 = sbr.rel target = $region3
    $region8: #{tpu_custom_call.1} parent=1 // loop_exit
      _
    %840 = vsyncpa [#allocation5], 1
    %s841 = scalar_lea.sflag [#allocation5], 1
    %842 = vsyncpa %s841, 1
    %843 = vsyncpa [#allocation8], 1
    %s844 = scalar_lea.sflag [#allocation8], 1
    %845 = vsyncpa %s844, 1
    %846 = vsyncpa [#allocation11], 1
    %847 = vsyncpa [#allocation6], 1
    %s848 = scalar_lea.sflag [#allocation6], 1
    %849 = vsyncpa %s848, 1

</llo_original>
